<compile_context>
chip_gen: v5e
topology: v5e:2x2
jax: 0.10.0
libtpu: 0.0.40
codegen_flags: <defaults>
</compile_context>

<pallas_src>
import functools

import numpy as np
import jax
import jax.numpy as jnp
from jax.experimental import pallas as pl
from jax.experimental.pallas import tpu as pltpu


# ----------------------------------------------------------------------------
# Kernels
# ----------------------------------------------------------------------------
def _pair_kernel_aligned(x_ref, o_ref, *, ti, tj, f):
    # F % 128 == 0: the concat boundaries 0 / F / 2F are lane-aligned, so the
    # three stores below are unmasked full-lane stores and no concatenated
    # temporary is materialized (halves the store-path VMEM traffic).
    # x_ref: (1, N, F)        full x[b], VMEM-resident across all (i, j) steps
    # o_ref: (1, TI, TJ, 3F)  output block
    i = pl.program_id(1)
    j = pl.program_id(2)
    xi = x_ref[0, pl.ds(pl.multiple_of(i * ti, ti), ti), :]      # (TI, F)
    xj = x_ref[0, pl.ds(pl.multiple_of(j * tj, tj), tj), :]      # (TJ, F)
    xi_b = jnp.broadcast_to(xi[:, None, :], (ti, tj, f))
    xj_b = jnp.broadcast_to(xj[None, :, :], (ti, tj, f))
    o_ref[0, :, :, 0:f] = xi_b
    o_ref[0, :, :, f:2 * f] = xj_b
    o_ref[0, :, :, 2 * f:3 * f] = xi_b * xj_b


def _pair_kernel_concat(x_ref, o_ref, *, ti, tj, f):
    # F % 128 != 0: concat boundaries are not lane-aligned, so build the block
    # once and store it with a single full-block store.
    # TODO(synk): for 3F % 128 != 0 a lane-dense flattened output (B, N, N*3F)
    # would avoid masked partial-lane stores, but the required in-kernel
    # minor-dim collapse reshape (TI, TJ, 3F) -> (TI, TJ*3F) is not reliably
    # lowerable by Mosaic for non-128-multiple minor dims, so the proven 4-D
    # store is kept on this path.
    i = pl.program_id(1)
    j = pl.program_id(2)
    xi = x_ref[0, pl.ds(pl.multiple_of(i * ti, ti), ti), :]      # (TI, F)
    xj = x_ref[0, pl.ds(pl.multiple_of(j * tj, tj), tj), :]      # (TJ, F)
    xi_b = jnp.broadcast_to(xi[:, None, :], (ti, tj, f))
    xj_b = jnp.broadcast_to(xj[None, :, :], (ti, tj, f))
    o_ref[0] = jnp.concatenate([xi_b, xj_b, xi_b * xj_b], axis=-1)


# ----------------------------------------------------------------------------
# Tiling / VMEM-budget selection (per TPU generation)
# ----------------------------------------------------------------------------
def _vmem_budget(N, F, itemsize):
    """Return (output_block_budget_bytes, vmem_limit_bytes)."""
    try:
        info = pltpu.get_tpu_info()
        cap = int(getattr(info, "vmem_capacity_bytes", 0)) or None
    except Exception:
        cap = None
    if cap is None:
        cap = 64 << 20  # conservative default: smallest per-core VMEM (v7x)

    # Scoped-VMEM limit requested from Mosaic: ~3/4 of physical, capped.
    vmem_limit = min((cap * 3) // 4, 100 << 20)

    slab = N * F * itemsize  # resident x[b] slab (may be double-buffered)
    # The output block is double-buffered; keep ~25% slack for Mosaic temps.
    budget = (int(vmem_limit * 0.75) - 2 * slab) // 2
    # Per-generation cap: ~16 MiB blocks on 128 MiB parts, ~8 MiB on 64 MiB.
    budget = max(1 << 20, min(budget, vmem_limit // 6))
    # TODO(synk): if the x[b] slab itself does not fit VMEM (huge N*F), this
    # kernel would need to stream xj slabs instead of keeping x[b] resident.
    return budget, int(vmem_limit)


def _pick_tiles(N, F, itemsize, block_budget_bytes):
    """Choose (TI, TJ) output tiles.

    * TJ == N whenever a (TI, N, 3F) block fits the budget (lane-dense rows,
      maximal reuse of the resident slab).
    * TI is the largest divisor-of-N multiple of the sublane count that fits,
      capped so N // TI >= 4 when possible (keeps pipeline steps per batch).
    * If even TI == sublane does not fit with TJ == N, tile the j axis too
      (required for large N*F on v7x's 64 MiB VMEM).
    """
    sub = {4: 8, 2: 16, 1: 32}.get(itemsize, 8)
    cands = [d for d in range(sub, N + 1, sub) if N % d == 0]
    if N not in cands:
        cands.append(N)
    min_t = min(cands)
    pair_bytes = 3 * F * itemsize  # bytes per (i, j) output pair

    # Preferred: full-N j tile.
    fit = [c for c in cands if c * N * pair_bytes <= block_budget_bytes]
    if fit:
        piped = [c for c in fit if N // c >= 4]
        return (max(piped) if piped else max(fit)), N

    # Fallback: minimal i tile, largest fitting j tile.
    ti = min_t
    fit_j = [c for c in cands if ti * c * pair_bytes <= block_budget_bytes]
    tj = max(fit_j) if fit_j else min_t
    return ti, tj


# ----------------------------------------------------------------------------
# Wrapper
# ----------------------------------------------------------------------------
def pair_representation(span_pair_indices, topk_span_states, k,
                        distance_embeddings):
    """Pallas implementation of PairRepresentation.forward.

    span_pair_indices   : (B, N, N, 4) int32  -- only feeds the dead-code
                                                 distance-embedding branch.
    topk_span_states    : (B, N, F)  float32
    k                   : int, must equal N (required by the torch expand/cat).
    distance_embeddings : (564, D) float32 embedding table (unused in output).
    """
    B, N, F = topk_span_states.shape
    assert k == N, "reference forward requires span_num == k"
    dtype = topk_span_states.dtype
    itemsize = jnp.dtype(dtype).itemsize

    budget, vmem_limit = _vmem_budget(N, F, itemsize)
    ti, tj = _pick_tiles(N, F, itemsize, budget)
    n_i, n_j = N // ti, N // tj

    aligned = (F % 128 == 0)
    kernel = functools.partial(
        _pair_kernel_aligned if aligned else _pair_kernel_concat,
        ti=ti, tj=tj, f=F)

    cost = pl.CostEstimate(
        flops=B * N * N * F,                                 # elementwise multiply
        transcendentals=0,
        bytes_accessed=(B * N * F * itemsize                 # read x once / batch
                        + B * N * N * 3 * F * itemsize),     # write pair tensor
    )

    out = pl.pallas_call(
        kernel,
        out_shape=jax.ShapeDtypeStruct((B, N, N, 3 * F), dtype),
        grid_spec=pltpu.PrefetchScalarGridSpec(
            num_scalar_prefetch=0,
            grid=(B, n_i, n_j),
            in_specs=[
                # Full x[b]; block index independent of (i, j) -> one DMA per
                # batch, revisited (VMEM-resident) across all inner steps.
                pl.BlockSpec((1, N, F), lambda b, i, j: (b, 0, 0)),
            ],
            out_specs=pl.BlockSpec((1, ti, tj, 3 * F),
                                   lambda b, i, j: (b, i, j, 0)),
        ),
        compiler_params=pltpu.CompilerParams(
            dimension_semantics=("parallel", "parallel", "parallel"),
            vmem_limit_bytes=vmem_limit),
        cost_estimate=cost,
    )(topk_span_states)

    # NOTE: the reference forward also buckets |span_pair_indices| distances
    # and looks them up in `distance_embeddings`, but that result is discarded
    # (dead code), so it is intentionally not computed here.
    return out


# ----------------------------------------------------------------------------
# Module parameters (mirror of __init__) and demo
# ----------------------------------------------------------------------------
def _make_params(distance_embeddings_dim, key):
    # __init__: bucket_bins has 10 + 5 + 1 + 15 + 1 + 31 + 1 + 500 = 564
    # entries; nn.Embedding(564, distance_embeddings_dim) ~ N(0, 1).
    bucket_bins = np.array(
        [0, 1, 2, 3, 4, 5, 6, 7, 8, 9] + [10] * 5 + [15] + [16] * 15
        + [31] + [32] * 31 + [63] + [64] * 500, dtype=np.int32)
    emb = jax.random.normal(key, (len(bucket_bins), distance_embeddings_dim),
                            dtype=jnp.float32)
    return jnp.asarray(bucket_bins), emb


def _reference(x):
    B, N, F = x.shape
    xi = jnp.broadcast_to(x[:, :, None, :], (B, N, N, F))
    xj = jnp.broadcast_to(x[:, None, :, :], (B, N, N, F))
    return jnp.concatenate([xi, xj, xi * xj], axis=-1)


if __name__ == "__main__":
    B, N = 2, 8                 # batch, span_num (= k)
    k = N
    D_dist = 16                 # distance_embeddings_dim

    key = jax.random.PRNGKey(0)
    k1, k2, k3, k4 = jax.random.split(key, 4)

    span_pair_indices = jax.random.randint(k2, (B, N, N, 4), 0, 64,
                                           dtype=jnp.int32)
    _, distance_embeddings = _make_params(D_dist, k3)

    # Exercise both store paths: F = 128 (lane-aligned direct stores) and
    # F = 32 (unaligned fallback, matching a small hidden size).
    for F, kk in ((128, k1), (32, k4)):
        topk_span_states = jax.random.normal(kk, (B, N, F), dtype=jnp.float32)
        out = pair_representation(span_pair_indices, topk_span_states, k,
                                  distance_embeddings)
        out = jax.block_until_ready(out)
        ref = _reference(topk_span_states)
        np.testing.assert_allclose(np.asarray(out), np.asarray(ref),
                                   rtol=1e-6, atol=1e-6)
        assert out.shape == (B, N, N, 3 * F)

    print("KERNEL_OK")
</pallas_src>

<mosaic_0001>
module attributes {stable_mosaic.version = 11 : i64} {
  func.func @_pair_kernel_aligned(%arg0: i32, %arg1: i32, %arg2: i32, %arg3: memref<1x8x128xf32, #tpu.memory_space<vmem>>, %arg4: memref<1x8x8x384xf32, #tpu.memory_space<vmem>>) attributes {dimension_semantics = [#tpu.dimension_semantics<parallel>, #tpu.dimension_semantics<parallel>, #tpu.dimension_semantics<parallel>], iteration_bounds = array<i64: 2, 1, 1>, scalar_prefetch = 0 : i64, scratch_operands = 0 : i64, tpu.core_type = #tpu.core_type<tc>, window_params = [{transform_indices = @transform_0, window_bounds = array<i64: 1, 8, 128>}, {transform_indices = @transform_1, window_bounds = array<i64: 1, 8, 8, 384>}]} {
    %c8_i32 = arith.constant 8 : i32
    %0 = arith.muli %arg1, %c8_i32 : i32
    %1 = tpu.assume_multiple %0, 8 : i32
    %c0 = arith.constant 0 : index
    %2 = arith.index_cast %1 : i32 to index
    %c0_0 = arith.constant 0 : index
    %3 = vector.load %arg3[%c0, %2, %c0_0] : memref<1x8x128xf32, #tpu.memory_space<vmem>>, vector<1x8x128xf32>
    %4 = vector.shape_cast %3 : vector<1x8x128xf32> to vector<8x128xf32>
    %c8_i32_1 = arith.constant 8 : i32
    %5 = arith.muli %arg2, %c8_i32_1 : i32
    %6 = tpu.assume_multiple %5, 8 : i32
    %c0_2 = arith.constant 0 : index
    %7 = arith.index_cast %6 : i32 to index
    %c0_3 = arith.constant 0 : index
    %8 = vector.load %arg3[%c0_2, %7, %c0_3] : memref<1x8x128xf32, #tpu.memory_space<vmem>>, vector<1x8x128xf32>
    %9 = vector.shape_cast %8 : vector<1x8x128xf32> to vector<8x128xf32>
    %10 = vector.shape_cast %4 : vector<8x128xf32> to vector<8x1x128xf32>
    %11 = vector.shape_cast %10 : vector<8x1x128xf32> to vector<8x1x128xf32>
    %12 = vector.broadcast %11 : vector<8x1x128xf32> to vector<8x8x128xf32>
    %13 = vector.shape_cast %9 : vector<8x128xf32> to vector<1x8x128xf32>
    %14 = vector.shape_cast %13 : vector<1x8x128xf32> to vector<1x8x128xf32>
    %15 = vector.broadcast %14 : vector<1x8x128xf32> to vector<8x8x128xf32>
    %c0_4 = arith.constant 0 : index
    %c0_5 = arith.constant 0 : index
    %c0_6 = arith.constant 0 : index
    %c0_7 = arith.constant 0 : index
    %16 = vector.load %arg4[%c0_4, %c0_5, %c0_6, %c0_7] : memref<1x8x8x384xf32, #tpu.memory_space<vmem>>, vector<1x8x8x128xf32>
    %17 = vector.shape_cast %16 : vector<1x8x8x128xf32> to vector<8x8x128xf32>
    %18 = vector.shape_cast %12 : vector<8x8x128xf32> to vector<1x8x8x128xf32>
    tpu.vector_store %arg4[%c0_4, %c0_5, %c0_6, %c0_7], %18 {strides = array<i32>} : memref<1x8x8x384xf32, #tpu.memory_space<vmem>>, vector<1x8x8x128xf32>,
    %c0_8 = arith.constant 0 : index
    %c0_9 = arith.constant 0 : index
    %c0_10 = arith.constant 0 : index
    %c128 = arith.constant 128 : index
    %19 = vector.load %arg4[%c0_8, %c0_9, %c0_10, %c128] : memref<1x8x8x384xf32, #tpu.memory_space<vmem>>, vector<1x8x8x128xf32>
    %20 = vector.shape_cast %19 : vector<1x8x8x128xf32> to vector<8x8x128xf32>
    %21 = vector.shape_cast %15 : vector<8x8x128xf32> to vector<1x8x8x128xf32>
    tpu.vector_store %arg4[%c0_8, %c0_9, %c0_10, %c128], %21 {strides = array<i32>} : memref<1x8x8x384xf32, #tpu.memory_space<vmem>>, vector<1x8x8x128xf32>,
    %22 = arith.mulf %12, %15 : vector<8x8x128xf32>
    %c0_11 = arith.constant 0 : index
    %c0_12 = arith.constant 0 : index
    %c0_13 = arith.constant 0 : index
    %c256 = arith.constant 256 : index
    %23 = vector.load %arg4[%c0_11, %c0_12, %c0_13, %c256] : memref<1x8x8x384xf32, #tpu.memory_space<vmem>>, vector<1x8x8x128xf32>
    %24 = vector.shape_cast %23 : vector<1x8x8x128xf32> to vector<8x8x128xf32>
    %25 = vector.shape_cast %22 : vector<8x8x128xf32> to vector<1x8x8x128xf32>
    tpu.vector_store %arg4[%c0_11, %c0_12, %c0_13, %c256], %25 {strides = array<i32>} : memref<1x8x8x384xf32, #tpu.memory_space<vmem>>, vector<1x8x8x128xf32>,
    return
  }
  func.func @transform_0(%arg0: i32, %arg1: i32, %arg2: i32) -> (i32, i32, i32) {
    %c0_i32 = arith.constant 0 : i32
    %c0_i32_0 = arith.constant 0 : i32
    %c0_i32_1 = arith.constant 0 : i32
    return %arg0, %c0_i32, %c0_i32_0 : i32, i32, i32
  }
  func.func @transform_1(%arg0: i32, %arg1: i32, %arg2: i32) -> (i32, i32, i32, i32) {
    %c0_i32 = arith.constant 0 : i32
    %c0_i32_0 = arith.constant 0 : i32
    return %arg0, %arg1, %arg2, %c0_i32 : i32, i32, i32, i32
  }
}

</mosaic_0001>

<llo_original>
// kernel: tpu_custom_call.1
$region0: #{tpu_custom_call.1}
  #allocation0 [shape = 'u32[]', space=smem, size = 0x4, offset = 0x4, fixed_abs, tag = 'smem constant byte address 0x4 - core index']
  #allocation1 [shape = 'u32[72,128]{1,0:T(1,128)}', space=vmem, size = 0x9000, scoped, tag = 'internal scratch']
  %s0 = inlined_call_operand.hbm [shape: f32[2,8,128], index: 0, kind: input, shape index: {}]
  %s1 = inlined_call_operand.hbm [shape: f32[2,8,8,384], index: 1, kind: output, shape index: {}]
  %s2 = sld [smem:[#allocation0]]
  $region41: #{tpu_custom_call.1} parent=0
    _
  %s4 = ssub.s32 1, %s2
  %s5 = scalar_select 0, %s4, %s2
  $region1: #{tpu_custom_call.1} parent=0
    #allocation2 [shape = 'u8[8192]{0}', space=vmem, size = 0x2000, scoped, tag = 'input window, operand 0']
    #allocation3 [shape = 's32[2]{0}', space=sflag, size = 0x8, scoped, tag = 'scoped memory for tpu_custom_call.1']
    #allocation4 [shape = 's32[2]{0}', space=sflag, size = 0x8, scoped, tag = 'scoped memory for tpu_custom_call.1']
    #allocation5 [shape = 'u8[196608]{0}', space=vmem, size = 0x30000, scoped, tag = 'output window, operand 0']
    %6 = vsyncpa [#allocation3], 0
    %s7 = scalar_lea.sflag [#allocation3], 1
    %8 = vsyncpa %s7, 0
    %9 = vsyncpa [#allocation4], 0
    %s10 = scalar_lea.sflag [#allocation4], 1
    %11 = vsyncpa %s10, 0
    loop: start=0, step=1, limit=4
    $region2: #{tpu_custom_call.1} parent=1 // loop_pre_header
      _
    $region3: #{tpu_custom_call.1} parent=1 // loop_header
      %s13 = sphi 0, %s17
      %p14 = scmp.ge.s32.totalorder %s13, 4
      %s20 = sphi 0, %s39
      %s21 = sphi 0, %s35
      %s22 = sphi 0, %s31
      %s23 = sphi 0, %s20
      %s24 = sphi 0, %s21
      %s25 = sphi 0, %s22
      %s26 = sphi 0, %s23
      %s27 = sphi 0, %s24
      %s28 = sphi 0, %s25
      %s42 = sphi 0, %s44
      %s45 = sphi 0, %s42
      %s46 = sphi 0, %s45
      %s62 = sphi 0, %s46
      %s72 = sphi 0, %s74
      %s75 = sphi 0, %s72
      %s76 = sphi 0, %s75
      %s92 = sphi 0, %s76
    $region4: #{tpu_custom_call.1} parent=1 // loop_header_branch
      %16 = sbr.rel (%p14) target = $region8
    $region5: #{tpu_custom_call.1} parent=1 // loop_body
      %s18 = ssub.s32 %s13, 1
      %s19 = ssub.s32 %s13, 2
      %s29 = sadd.s32 1, %s22
      %p30 = scmp.ge.s32.totalorder %s29, 1
      %s31 = scalar_select %p30, 0, %s29
      %s32 = sadd.s32 1, %s21
      %s33 = scalar_select %p30, %s32, %s21
      %p34 = scmp.ge.s32.totalorder %s33, 1
      %s35 = scalar_select %p34, 0, %s33
      %s36 = sadd.s32 1, %s20
      %s37 = scalar_select %p34, %s36, %s20
      %p38 = scmp.ge.s32.totalorder %s37, 2
      %s39 = scalar_select %p38, 0, %s37
      %s40 = ssub.s32 %s20, %s39
      %p41 = scmp.eq.s32.totalorder %s40, 0
      %s43 = sadd.s32 %s42, 1
      %s44 = scalar_select %p41, %s42, %s43
      %p47 = pneg %p41
      %p48 = scmp.eq.s32.totalorder %s13, 1
      %p49 = por %p47, %p48
      %p50 = scmp.ne.s32.totalorder %s42, %s45
      %p51 = scmp.eq.s32.totalorder %s13, 0
      %p52 = por %p50, %p51
      %p53 = scmp.ne.s32.totalorder %s42, %s45
      %p54 = scmp.eq.s32.totalorder %s18, 1
      %p55 = por %p53, %p54
      %p56 = scmp.ne.s32.totalorder %s45, %s46
      %p57 = scmp.eq.s32.totalorder %s18, 0
      %p58 = por %p56, %p57
      %p59 = scmp.ne.s32.totalorder %s45, %s46
      %p60 = scmp.eq.s32.totalorder %s19, 1
      %p61 = por %p59, %p60
      %p63 = scmp.ne.s32.totalorder %s46, %s62
      %p64 = scmp.eq.s32.totalorder %s19, 0
      %p65 = por %p63, %p64
      %s66 = ssub.s32 %s20, %s39
      %s67 = ssub.s32 %s21, %s35
      %s68 = sor.u32 %s66, %s67
      %s69 = ssub.s32 %s22, %s31
      %s70 = sor.u32 %s68, %s69
      %p71 = scmp.eq.s32.totalorder %s70, 0
      %s73 = sadd.s32 %s72, 1
      %s74 = scalar_select %p71, %s72, %s73
      %p77 = pneg %p71
      %p78 = scmp.eq.s32.totalorder %s13, 1
      %p79 = por %p77, %p78
      %p80 = scmp.ne.s32.totalorder %s72, %s75
      %p81 = scmp.eq.s32.totalorder %s13, 0
      %p82 = por %p80, %p81
      %p83 = scmp.ne.s32.totalorder %s72, %s75
      %p84 = scmp.eq.s32.totalorder %s18, 1
      %p85 = por %p83, %p84
      %p86 = scmp.ne.s32.totalorder %s75, %s76
      %p87 = scmp.eq.s32.totalorder %s18, 0
      %p88 = por %p86, %p87
      %p89 = scmp.ne.s32.totalorder %s75, %s76
      %p90 = scmp.eq.s32.totalorder %s19, 1
      %p91 = por %p89, %p90
      %p93 = scmp.ne.s32.totalorder %s76, %s92
      %p94 = scmp.eq.s32.totalorder %s19, 0
      %p95 = por %p93, %p94
      %p96 = scmp.le.s32.totalorder 1, %s13
      %p97 = scmp.lt.s32.totalorder %s13, 3
      %p98 = pnand %p96, %p97
      %p99 = pneg %p98
      // Predicated region
      $region9: #{tpu_custom_call.1} parent=5 // pred_check
        _
      $region10: #{tpu_custom_call.1} parent=5 // pred_check_branch
        %101 = sbr.rel (%p98) target = $region12
      $region11: #{tpu_custom_call.1} parent=5 // pred_region
        %s102 = ssub.s32 %s13, 1
      $region12: #{tpu_custom_call.1} parent=5 // pred_fallthru
        _
      %p103 = scmp.lt.s32.totalorder %s13, 2
      // Predicated region
      $region13: #{tpu_custom_call.1} parent=5 // pred_check
        %p104 = pneg %p103
      $region14: #{tpu_custom_call.1} parent=5 // pred_check_branch
        %106 = sbr.rel (%p104) target = $region16
      $region15: #{tpu_custom_call.1} parent=5 // pred_region
        // Predicated region
        $region17: #{tpu_custom_call.1} parent=15 // pred_check
          %p107 = pneg %p52
        $region18: #{tpu_custom_call.1} parent=15 // pred_check_branch
          %109 = sbr.rel (%p107) target = $region20
        $region19: #{tpu_custom_call.1} parent=15 // pred_region
          %s110 = sand.u32 %s42, 1
          %s111 = scalar_lea.sflag [#allocation3], %s110
          %s112 = sand.u32 %s42, 1
          %s113 = smul.addr %s112, 8
          %s114 = scalar_lea.vmem [#allocation2], %s113
          %116 = vsyncadd %s111, 0
          %s117 = smul.addr %s20, 8
          %s118 = scalar_lea.hbm %s0, %s117
          %s120 = sshll.u32 %s118, 4
          %s121 = int_to_ptr.hbm [resolvable:$true] %s120
          %s122 = sshll.u32 %s114, 4
          %s123 = int_to_ptr.vmem [resolvable:$true] %s122
          %125 = dma.hbm_to_vmem [thread:$0]  %s121, 128, %s123, %s111
        $region20: #{tpu_custom_call.1} parent=15 // pred_fallthru
          _
      $region16: #{tpu_custom_call.1} parent=5 // pred_fallthru
        _
      %p126 = scmp.le.s32.totalorder 1, %s13
      %p127 = scmp.lt.s32.totalorder %s13, 3
      %p128 = pnand %p126, %p127
      %p129 = pneg %p128
      // Predicated region
      $region21: #{tpu_custom_call.1} parent=5 // pred_check
        _
      $region22: #{tpu_custom_call.1} parent=5 // pred_check_branch
        %131 = sbr.rel (%p128) target = $region24
      $region23: #{tpu_custom_call.1} parent=5 // pred_region
        %s132 = ssub.s32 %s13, 1
        %s133 = sand.u32 %s45, 1
        %s134 = scalar_lea.sflag [#allocation3], %s133
        %s135 = sand.u32 %s45, 1
        %s136 = smul.addr %s135, 8
        %s137 = scalar_lea.vmem [#allocation2], %s136
        // Predicated region
        $region25: #{tpu_custom_call.1} parent=23 // pred_check
          %p138 = pneg %p58
        $region26: #{tpu_custom_call.1} parent=23 // pred_check_branch
          %140 = sbr.rel (%p138) target = $region28
        $region27: #{tpu_custom_call.1} parent=23 // pred_region
          %142 = dma.done %s134, 128
        $region28: #{tpu_custom_call.1} parent=23 // pred_fallthru
          _
        %s143 = sand.u32 %s45, 1
        %s144 = scalar_lea.sflag [#allocation3], %s143
        %s145 = sand.u32 %s45, 1
        %s146 = smul.addr %s145, 8
        %s147 = scalar_lea.vmem [#allocation2], %s146
        %p148 = pneg %p58
        %p149 = pneg %p55
        %p150 = pneg %p88
        %p151 = pneg %p85
        %s152 = sand.u32 %s75, 1
        %s153 = scalar_lea.sflag [#allocation4], %s152
        %s154 = sand.u32 %s75, 1
        %s155 = smul.addr %s154, 192
        %s156 = scalar_lea.vmem [#allocation5], %s155
        %s157 = smul.u32 8, %s24
        %s158 = smul.u32 %s24, 8
        %s159 = scalar_lea.vmem %s137, %s158 [#allocation2]
        %v160 = vld [vmem:[%s159] sm:$0xff]
        %s161 = smul.u32 %s25, 8
        %s162 = scalar_lea.vmem %s137, %s161 [#allocation2]
        %v163 = vld [vmem:[%s162] sm:$0xff]
        %v165 = vrot.slane %v160, 1
        %v166 = vrot.slane %v160, 2
        %v167 = vrot.slane %v160, 3
        %v168 = vrot.slane %v160, 4
        %v169 = vrot.slane %v160, 5
        %v170 = vrot.slane %v160, 6
        %v171 = vrot.slane %v160, 7
        %v172 = vperm.slane %v160, 0
        %v173 = vperm.slane %v165, 0
        %v174 = vperm.slane %v166, 0
        %v175 = vperm.slane %v167, 0
        %v176 = vperm.slane %v168, 0
        %v177 = vperm.slane %v169, 0
        %v178 = vperm.slane %v170, 0
        %v179 = vperm.slane %v171, 0
        %188 = vst [vmem:[%s156] sm:$0xff] %v172
        %189 = vst [vmem:[%s156 + $0x18] sm:$0xff] %v173
        %190 = vst [vmem:[%s156 + $0x30] sm:$0xff] %v174
        %191 = vst [vmem:[%s156 + $0x48] sm:$0xff] %v175
        %192 = vst [vmem:[%s156 + $0x60] sm:$0xff] %v176
        %193 = vst [vmem:[%s156 + $0x78] sm:$0xff] %v177
        %194 = vst [vmem:[%s156 + $0x90] sm:$0xff] %v178
        %195 = vst [vmem:[%s156 + $0xa8] sm:$0xff] %v179
        %196 = vst [vmem:[%s156 + $0x8] sm:$0xff] %v163
        %197 = vst [vmem:[%s156 + $0x20] sm:$0xff] %v163
        %198 = vst [vmem:[%s156 + $0x38] sm:$0xff] %v163
        %199 = vst [vmem:[%s156 + $0x50] sm:$0xff] %v163
        %200 = vst [vmem:[%s156 + $0x68] sm:$0xff] %v163
        %201 = vst [vmem:[%s156 + $0x80] sm:$0xff] %v163
        %202 = vst [vmem:[%s156 + $0x98] sm:$0xff] %v163
        %203 = vst [vmem:[%s156 + $0xb0] sm:$0xff] %v163
        %v204 = vmul.f32 %v172, %v163
        %v205 = vmul.f32 %v173, %v163
        %v206 = vmul.f32 %v174, %v163
        %v207 = vmul.f32 %v175, %v163
        %v208 = vmul.f32 %v176, %v163
        %v209 = vmul.f32 %v177, %v163
        %v210 = vmul.f32 %v178, %v163
        %v211 = vmul.f32 %v179, %v163
        %212 = vst [vmem:[%s156 + $0x10] sm:$0xff] %v204
        %213 = vst [vmem:[%s156 + $0x28] sm:$0xff] %v205
        %214 = vst [vmem:[%s156 + $0x40] sm:$0xff] %v206
        %215 = vst [vmem:[%s156 + $0x58] sm:$0xff] %v207
        %216 = vst [vmem:[%s156 + $0x70] sm:$0xff] %v208
        %217 = vst [vmem:[%s156 + $0x88] sm:$0xff] %v209
        %218 = vst [vmem:[%s156 + $0xa0] sm:$0xff] %v210
        %219 = vst [vmem:[%s156 + $0xb8] sm:$0xff] %v211
        %s220 = sand.u32 %s75, 1
        %s221 = scalar_lea.sflag [#allocation4], %s220
        %s222 = sand.u32 %s75, 1
        %s223 = smul.addr %s222, 192
        %s224 = scalar_lea.vmem [#allocation5], %s223
        // Predicated region
        $region29: #{tpu_custom_call.1} parent=23 // pred_check
          %p225 = pneg %p85
        $region30: #{tpu_custom_call.1} parent=23 // pred_check_branch
          %227 = sbr.rel (%p225) target = $region32
        $region31: #{tpu_custom_call.1} parent=23 // pred_region
          %s228 = smul.u32 8, %s24
          %230 = vsyncadd %s221, 0
          %s231 = smul.addr %s25, 3
          %s232 = smul.addr %s228, 3
          %s233 = sadd.s32 %s231, %s232
          %s234 = smul.addr %s23, 24
          %s235 = sadd.s32 %s233, %s234
          %s236 = smul.addr %s235, 8
          %s237 = scalar_lea.hbm %s1, %s236
          %s238 = sshll.u32 %s224, 4
          %s239 = int_to_ptr.vmem [resolvable:$true] %s238
          %s240 = sshll.u32 %s237, 4
          %s241 = int_to_ptr.hbm [resolvable:$true] %s240
          %246 = dma.vmem_to_hbm [thread:$0]  %s239, 3072, %s241, %s221, 384, 384, 24
        $region32: #{tpu_custom_call.1} parent=23 // pred_fallthru
          _
      $region24: #{tpu_custom_call.1} parent=5 // pred_fallthru
        _
      %p247 = scmp.le.s32.totalorder 2, %s13
      // Predicated region
      $region33: #{tpu_custom_call.1} parent=5 // pred_check
        %p248 = pneg %p247
      $region34: #{tpu_custom_call.1} parent=5 // pred_check_branch
        %250 = sbr.rel (%p248) target = $region36
      $region35: #{tpu_custom_call.1} parent=5 // pred_region
        %s251 = ssub.s32 %s13, 2
        // Predicated region
        $region37: #{tpu_custom_call.1} parent=35 // pred_check
          %p252 = pneg %p91
        $region38: #{tpu_custom_call.1} parent=35 // pred_check_branch
          %254 = sbr.rel (%p252) target = $region40
        $region39: #{tpu_custom_call.1} parent=35 // pred_region
          %s255 = sand.u32 %s76, 1
          %s256 = scalar_lea.sflag [#allocation4], %s255
          %s257 = sand.u32 %s76, 1
          %s258 = smul.addr %s257, 192
          %s259 = scalar_lea.vmem [#allocation5], %s258
          %261 = dma.done %s256, 3072
        $region40: #{tpu_custom_call.1} parent=35 // pred_fallthru
          _
      $region36: #{tpu_custom_call.1} parent=5 // pred_fallthru
        _
    $region6: #{tpu_custom_call.1} parent=1 // loop_footer
      %s17 = sadd.s32 1, %s13
    $region7: #{tpu_custom_call.1} parent=1 // loop_footer_branch
      %12 = sbr.rel target = $region3
    $region8: #{tpu_custom_call.1} parent=1 // loop_exit
      _
    %262 = vsyncpa [#allocation3], 1
    %s263 = scalar_lea.sflag [#allocation3], 1
    %264 = vsyncpa %s263, 1
    %265 = vsyncpa [#allocation4], 1
    %s266 = scalar_lea.sflag [#allocation4], 1
    %267 = vsyncpa %s266, 1

</llo_original>
